<compile_context>
chip_gen: v7x
topology: tpu7x:2x2x1
jax: 0.10.0
libtpu: 0.0.40
codegen_flags: <defaults>
</compile_context>

<pallas_src>
import jax
import jax.numpy as jnp
from jax import lax
from jax.experimental import pallas as pl
from jax.experimental.pallas import tpu as pltpu


# ---------------------------------------------------------------------------
# Hardware-aware sizing helpers
# ---------------------------------------------------------------------------

def _round_up(v, m):
    return ((v + m - 1) // m) * m


def _divisors(n):
    return [d for d in range(1, n + 1) if n % d == 0]


def _largest_divisor_leq(n, cap):
    cap = max(1, min(cap, n))
    best = 1
    for d in _divisors(n):
        if d <= cap:
            best = d
    return best


def _slab_bytes(rows, lanes, itemsize):
    """Padded VMEM footprint of a (rows, lanes) slab (last-two-dims tiling)."""
    sublane = 8 * max(1, 4 // itemsize)
    return _round_up(rows, sublane) * _round_up(lanes, 128) * itemsize


def _vmem_budget_and_limit():
    """Generation-aware VMEM budget for tile sizing + Mosaic scoped limit.

    ~37.5% of physical VMEM for our double-buffered blocks, 50% as the scoped
    limit (headroom for compiler-internal scratch).  Falls back to v7x-safe
    numbers (64 MiB per TensorCore) if the query is unavailable.
    """
    try:
        cap = int(pltpu.get_tpu_info().vmem_capacity_bytes)
    except Exception:
        cap = 64 * 1024 * 1024
    budget = (cap * 3) // 8                      # 24 MiB v7x, 48 MiB v5e/v6e
    limit = min(cap // 2, 64 * 1024 * 1024)      # 32 MiB v7x, 64 MiB v5e/v6e
    limit = max(limit, 32 * 1024 * 1024)
    return budget, limit


# ---------------------------------------------------------------------------
# Path 1: lane-dense L -- native layout, no wrapper transposes at all.
# ---------------------------------------------------------------------------

def _nconv_native_kernel(a_ref, x_ref, o_ref):
    # a_ref: (1, W, V), x_ref: (1, TILE_C, V, L), o_ref: (1, TILE_C, W, L)
    a = a_ref[0]                                  # (W, V)
    tile_c = x_ref.shape[1]
    for c in range(tile_c):                       # static unroll, TILE_C small
        o_ref[0, c] = jnp.dot(
            a, x_ref[0, c], preferred_element_type=jnp.float32
        ).astype(o_ref.dtype)


def _choose_native_tile_c(C, V, W, L, itemsize, budget, unroll_cap=8):
    half = max(budget // 2, 1)                    # double-buffering factor
    per_c = _slab_bytes(V, L, itemsize) + _slab_bytes(W, L, itemsize)
    a_b = _slab_bytes(W, V, itemsize)
    cap = max(1, (half - a_b) // max(per_c, 1)) if half > a_b else 1
    return _largest_divisor_leq(C, min(cap, unroll_cap))


def _nconv_native(x, A, tile_c):
    N, C, V, L = x.shape
    _, W, _ = A.shape
    itemsize = jnp.dtype(x.dtype).itemsize
    budget, vmem_limit = _vmem_budget_and_limit()

    if tile_c is None:
        tile_c = _choose_native_tile_c(C, V, W, L, itemsize, budget)
    else:
        tile_c = _largest_divisor_leq(C, tile_c)

    grid = (N, C // tile_c)                       # A block revisited across c
    a_spec = pl.BlockSpec((1, W, V), lambda n, c: (n, 0, 0))
    x_spec = pl.BlockSpec((1, tile_c, V, L), lambda n, c: (n, c, 0, 0))
    o_spec = pl.BlockSpec((1, tile_c, W, L), lambda n, c: (n, c, 0, 0))

    cost = pl.CostEstimate(
        flops=2 * N * C * W * V * L,
        transcendentals=0,
        bytes_accessed=itemsize * (N * C * V * L + N * W * V + N * C * W * L),
    )

    return pl.pallas_call(
        _nconv_native_kernel,
        out_shape=jax.ShapeDtypeStruct((N, C, W, L), x.dtype),
        grid_spec=pltpu.PrefetchScalarGridSpec(
            num_scalar_prefetch=0,
            grid=grid,
            in_specs=[a_spec, x_spec],
            out_specs=o_spec,
        ),
        compiler_params=pltpu.CompilerParams(
            dimension_semantics=("parallel", "parallel"),
            vmem_limit_bytes=vmem_limit,
        ),
        cost_estimate=cost,
    )(A, x)


# ---------------------------------------------------------------------------
# Path 2: small L -- lane-dense flattened (V, C*L) batched matmul.
# ---------------------------------------------------------------------------

def _nconv_flat_kernel(a_ref, x_ref, o_ref):
    # a_ref: (TILE_N, W, V), x_ref: (TILE_N, V, TILE_M), o_ref: (TILE_N, W, TILE_M)
    o_ref[...] = lax.dot_general(
        a_ref[...],
        x_ref[...],
        dimension_numbers=(((2,), (1,)), ((0,), (0,))),   # batched 'bwv,bvm->bwm'
        preferred_element_type=jnp.float32,
    ).astype(o_ref.dtype)


def _choose_flat_tiles(N, m128, V, W, itemsize, budget,
                       lane_cap=2048, target_step_bytes=3 << 20):
    """Pick (tile_n, tile_m) for the flattened path."""
    sub = 8 * max(1, 4 // itemsize)
    pV, pW = _round_up(V, sub), _round_up(W, sub)
    half = max(budget // 2, 1)                    # double-buffering factor
    a_bytes = _slab_bytes(W, V, itemsize)

    # Lane tile: multiple of 128, capped (>2048 lanes buys <1%), sized so one
    # n's x+out blocks plus A fit half the budget.
    tm_cap = min(m128, lane_cap)
    tm_fit = ((half - a_bytes) // max((pV + pW) * itemsize, 1)) // 128 * 128
    tm = max(128, min(tm_cap, tm_fit))

    # Batch several n per grid step so each step moves a few MB (amortizes the
    # ~0.35us/step fixed overhead) while staying inside the VMEM budget.
    per_n_vmem = (pV + pW) * tm * itemsize + a_bytes
    per_n_hbm = itemsize * ((V + W) * tm + W * V)
    want = -(-target_step_bytes // max(per_n_hbm, 1))
    fit = max(1, half // max(per_n_vmem, 1))
    tn = _largest_divisor_leq(N, max(1, min(want, fit)))
    return tn, tm


def _nconv_flat(x, A, tile_n, tile_m):
    N, C, V, L = x.shape
    _, W, _ = A.shape
    itemsize = jnp.dtype(x.dtype).itemsize
    budget, vmem_limit = _vmem_budget_and_limit()

    M = C * L
    m128 = _round_up(M, 128)
    auto_tn, auto_tm = _choose_flat_tiles(N, m128, V, W, itemsize, budget)
    tile_n = auto_tn if tile_n is None else _largest_divisor_leq(N, tile_n)
    if tile_m is None:
        tile_m = auto_tm
    else:
        tile_m = min(max(128, _round_up(tile_m, 128)), m128)

    M_pad = _round_up(M, tile_m)                  # every lane block is full

    # Single XLA relayout to a lane-dense (N, V, C*L) presentation -- needed
    # because the MXU wants a wide lane dim and L itself is not lane-dense.
    xt = jnp.transpose(x, (0, 2, 1, 3)).reshape(N, V, M)
    if M_pad != M:
        xt = jnp.pad(xt, ((0, 0), (0, 0), (0, M_pad - M)))

    grid = (N // tile_n, M_pad // tile_m)         # m innermost: A not re-DMA'd
    a_spec = pl.BlockSpec((tile_n, W, V), lambda i, j: (i, 0, 0))
    x_spec = pl.BlockSpec((tile_n, V, tile_m), lambda i, j: (i, 0, j))
    o_spec = pl.BlockSpec((tile_n, W, tile_m), lambda i, j: (i, 0, j))

    cost = pl.CostEstimate(
        flops=2 * N * C * W * V * L,
        transcendentals=0,
        bytes_accessed=itemsize * (N * V * M_pad + N * W * V + N * W * M_pad),
    )

    out_flat = pl.pallas_call(
        _nconv_flat_kernel,
        out_shape=jax.ShapeDtypeStruct((N, W, M_pad), x.dtype),
        grid_spec=pltpu.PrefetchScalarGridSpec(
            num_scalar_prefetch=0,
            grid=grid,
            in_specs=[a_spec, x_spec],
            out_specs=o_spec,
        ),
        compiler_params=pltpu.CompilerParams(
            dimension_semantics=("parallel", "parallel"),
            vmem_limit_bytes=vmem_limit,
        ),
        cost_estimate=cost,
    )(A, xt)

    if M_pad != M:
        out_flat = out_flat[:, :, :M]
    # (N, W, C*L) -> (N, W, C, L) -> (N, C, W, L)
    return jnp.transpose(out_flat.reshape(N, W, C, L), (0, 2, 1, 3))


# ---------------------------------------------------------------------------
# Public entry point
# ---------------------------------------------------------------------------

def nconv(x: jax.Array, A: jax.Array, *, tile_n=None, tile_m=None, tile_c=None):
    """Pallas equivalent of torch.einsum('ncvl,nwv->ncwl', (x, A)).contiguous().

    x: (N, C, V, L), A: (N, W, V) -> out: (N, C, W, L)
    """
    N, C, V, L = x.shape
    Na, W, Va = A.shape
    assert Na == N and Va == V, "shape mismatch between x and A"

    if L % 128 == 0:
        # Lane-dense L: consume x / produce out natively, no XLA transposes.
        return _nconv_native(x, A, tile_c)
    # Small L: lane-dense flattened matmul with n-batched grid steps.
    return _nconv_flat(x, A, tile_n, tile_m)


def nconv_ref(x: jax.Array, A: jax.Array) -> jax.Array:
    return jnp.einsum("ncvl,nwv->ncwl", x, A, precision=lax.Precision.HIGHEST)


if __name__ == "__main__":
    key = jax.random.PRNGKey(0)
    k1, k2, k3, k4, k5, k6 = jax.random.split(key, 6)

    # 1) Small shapes consistent with the module's forward (flattened path,
    #    auto tiles):  x (N, C, V, L), A (N, W, V).
    N, C, V, W, L = 2, 4, 16, 8, 16
    x = jax.random.normal(k1, (N, C, V, L), dtype=jnp.float32)
    A = jax.random.normal(k2, (N, W, V), dtype=jnp.float32)
    out = jax.block_until_ready(nconv(x, A))
    ref = nconv_ref(x, A)
    assert out.shape == (N, C, W, L), out.shape
    assert jnp.allclose(out, ref, atol=2e-4, rtol=2e-4), "mismatch (flat, auto)"

    # 2) Flattened path with n-batching, multiple lane tiles and lane padding
    #    (C*L = 288 -> padded to 384, grid (2, 3)).
    N2, C2, V2, W2, L2 = 4, 6, 24, 24, 48
    x2 = jax.random.normal(k3, (N2, C2, V2, L2), dtype=jnp.float32)
    A2 = jax.random.normal(k4, (N2, W2, V2), dtype=jnp.float32)
    out2 = jax.block_until_ready(nconv(x2, A2, tile_n=2, tile_m=128))
    ref2 = nconv_ref(x2, A2)
    assert out2.shape == (N2, C2, W2, L2), out2.shape
    assert jnp.allclose(out2, ref2, atol=2e-4, rtol=2e-4), "mismatch (flat, tiled)"

    # 3) Lane-dense L: native-layout path (no wrapper transposes at all).
    N3, C3, V3, W3, L3 = 2, 4, 16, 8, 128
    x3 = jax.random.normal(k5, (N3, C3, V3, L3), dtype=jnp.float32)
    A3 = jax.random.normal(k6, (N3, W3, V3), dtype=jnp.float32)
    out3 = jax.block_until_ready(nconv(x3, A3, tile_c=2))
    ref3 = nconv_ref(x3, A3)
    assert out3.shape == (N3, C3, W3, L3), out3.shape
    assert jnp.allclose(out3, ref3, atol=2e-4, rtol=2e-4), "mismatch (native)"

    print("KERNEL_OK")
</pallas_src>

<mosaic_0001>
module attributes {stable_mosaic.version = 11 : i64} {
  func.func @_nconv_flat_kernel(%arg0: i32, %arg1: i32, %arg2: memref<2x8x16xf32, #tpu.memory_space<vmem>>, %arg3: memref<2x16x128xf32, #tpu.memory_space<vmem>>, %arg4: memref<2x8x128xf32, #tpu.memory_space<vmem>>) attributes {dimension_semantics = [#tpu.dimension_semantics<parallel>, #tpu.dimension_semantics<parallel>], iteration_bounds = array<i64: 1, 1>, scalar_prefetch = 0 : i64, scratch_operands = 0 : i64, tpu.core_type = #tpu.core_type<tc>, window_params = [{transform_indices = @transform_0, window_bounds = array<i64: 2, 8, 16>}, {transform_indices = @transform_1, window_bounds = array<i64: 2, 16, 128>}, {transform_indices = @transform_2, window_bounds = array<i64: 2, 8, 128>}]} {
    %c0 = arith.constant 0 : index
    %c0_0 = arith.constant 0 : index
    %c0_1 = arith.constant 0 : index
    %0 = vector.load %arg2[%c0, %c0_0, %c0_1] : memref<2x8x16xf32, #tpu.memory_space<vmem>>, vector<2x8x16xf32>
    %c0_2 = arith.constant 0 : index
    %c0_3 = arith.constant 0 : index
    %c0_4 = arith.constant 0 : index
    %1 = vector.load %arg3[%c0_2, %c0_3, %c0_4] : memref<2x16x128xf32, #tpu.memory_space<vmem>>, vector<2x16x128xf32>
    %cst = arith.constant dense<0.000000e+00> : vector<2x8x128xf32>
    %2 = tpu.matmul %0, %1, %cst {dimension_numbers = #tpu.dot_dimension_numbers<[2], [1], [1], [2], [0, 0, 0, 1, 1, 2], [0], [0]>} : vector<2x8x16xf32>, vector<2x16x128xf32>, vector<2x8x128xf32> -> vector<2x8x128xf32>
    %c0_5 = arith.constant 0 : index
    %c0_6 = arith.constant 0 : index
    %c0_7 = arith.constant 0 : index
    %3 = vector.load %arg4[%c0_5, %c0_6, %c0_7] : memref<2x8x128xf32, #tpu.memory_space<vmem>>, vector<2x8x128xf32>
    tpu.vector_store %arg4[%c0_5, %c0_6, %c0_7], %2 {strides = array<i32>} : memref<2x8x128xf32, #tpu.memory_space<vmem>>, vector<2x8x128xf32>,
    return
  }
  func.func @transform_0(%arg0: i32, %arg1: i32) -> (i32, i32, i32) {
    %c0_i32 = arith.constant 0 : i32
    %c0_i32_0 = arith.constant 0 : i32
    %c0_i32_1 = arith.constant 0 : i32
    return %arg0, %c0_i32, %c0_i32_0 : i32, i32, i32
  }
  func.func @transform_1(%arg0: i32, %arg1: i32) -> (i32, i32, i32) {
    %c0_i32 = arith.constant 0 : i32
    %c0_i32_0 = arith.constant 0 : i32
    return %arg0, %c0_i32, %arg1 : i32, i32, i32
  }
  func.func @transform_2(%arg0: i32, %arg1: i32) -> (i32, i32, i32) {
    %c0_i32 = arith.constant 0 : i32
    %c0_i32_0 = arith.constant 0 : i32
    return %arg0, %c0_i32, %arg1 : i32, i32, i32
  }
}

</mosaic_0001>

<llo_original>
// kernel: tpu_custom_call.1
$region0: #{tpu_custom_call.1}
  #allocation0 [shape = 'u32[]', space=smem, size = 0x4, offset = 0x4, fixed_abs, tag = 'smem constant byte address 0x4 - core index']
  #allocation1 [shape = 'u32[144,128]{1,0:T(1,128)}', space=vmem, size = 0x12000, scoped, tag = 'internal scratch']
  %s0 = inlined_call_operand.hbm [shape: f32[2,8,16], index: 0, kind: input, shape index: {}]
  %s1 = inlined_call_operand.hbm [shape: f32[2,16,128], index: 1, kind: input, shape index: {}]
  %s2 = inlined_call_operand.hbm [shape: f32[2,8,128], index: 2, kind: output, shape index: {}]
  %s3 = sld [smem:[#allocation0]]
  $region26: #{tpu_custom_call.1} parent=0
    _
  %s5 = ssub.s32 1, %s3
  %s6 = scalar_select 0, %s5, %s3
  $region1: #{tpu_custom_call.1} parent=0
    #allocation2 [shape = 'u8[8192]{0}', space=vmem, size = 0x2000, scoped, tag = 'input window, operand 0, single buffered']
    #allocation3 [shape = 's32[1]{0}', space=sflag, size = 0x4, scoped, tag = 'scoped memory for tpu_custom_call.1']
    #allocation4 [shape = 's32[1]{0}', space=sflag, size = 0x4, scoped, tag = 'scoped memory for tpu_custom_call.1']
    #allocation5 [shape = 'u8[16384]{0}', space=vmem, size = 0x4000, scoped, tag = 'input window, operand 1, single buffered']
    #allocation6 [shape = 's32[1]{0}', space=sflag, size = 0x4, scoped, tag = 'scoped memory for tpu_custom_call.1']
    #allocation7 [shape = 'u8[8192]{0}', space=vmem, size = 0x2000, scoped, tag = 'output window, operand 0, single buffered']
    %7 = vsyncpa [#allocation3], 0
    %8 = vsyncpa [#allocation6], 0
    %9 = vsyncpa [#allocation4], 0
    // Predicated region
    $region2: #{tpu_custom_call.1} parent=1 // pred_check
      _
    $region3: #{tpu_custom_call.1} parent=1 // pred_check_branch
      %11 = sbr.rel (0) target = $region5
    $region4: #{tpu_custom_call.1} parent=1 // pred_region
      %s13 = ssub.s32 256, 256
      %14 = vsyncadd [#allocation3], %s13
      %s15 = sshll.u32 [#allocation2], 4
      %s16 = int_to_ptr.vmem [resolvable:$true] %s15
      %21 = dma.hbm_to_vmem [thread:$0]  %s0, 256, %s16, [#allocation3], 128, 128, 8
    $region5: #{tpu_custom_call.1} parent=1 // pred_fallthru
      _
    // Predicated region
    $region6: #{tpu_custom_call.1} parent=1 // pred_check
      _
    $region7: #{tpu_custom_call.1} parent=1 // pred_check_branch
      %23 = sbr.rel (0) target = $region9
    $region8: #{tpu_custom_call.1} parent=1 // pred_region
      %s25 = ssub.s32 512, 512
      %26 = vsyncadd [#allocation6], %s25
      %s27 = sshll.u32 [#allocation5], 4
      %s28 = int_to_ptr.vmem [resolvable:$true] %s27
      %33 = dma.hbm_to_vmem [thread:$0]  %s1, 512, %s28, [#allocation6], 128, 128, 8
    $region9: #{tpu_custom_call.1} parent=1 // pred_fallthru
      _
    // Predicated region
    $region10: #{tpu_custom_call.1} parent=1 // pred_check
      _
    $region11: #{tpu_custom_call.1} parent=1 // pred_check_branch
      %35 = sbr.rel (0) target = $region13
    $region12: #{tpu_custom_call.1} parent=1 // pred_region
      %36 = dma.done [#allocation3], 256
    $region13: #{tpu_custom_call.1} parent=1 // pred_fallthru
      _
    // Predicated region
    $region14: #{tpu_custom_call.1} parent=1 // pred_check
      _
    $region15: #{tpu_custom_call.1} parent=1 // pred_check_branch
      %38 = sbr.rel (0) target = $region17
    $region16: #{tpu_custom_call.1} parent=1 // pred_region
      %39 = dma.done [#allocation6], 512
    $region17: #{tpu_custom_call.1} parent=1 // pred_fallthru
      _
    %v40 = vld [vmem:[#allocation2] sm:$0xff]
    %v41 = vld [vmem:[#allocation2 + $0x8] sm:$0xff]
    %v42 = vld [vmem:[#allocation5] sm:$0xff]
    %v43 = vld [vmem:[#allocation5 + $0x8] sm:$0xff]
    %v44 = vld [vmem:[#allocation5 + $0x10] sm:$0xff]
    %v45 = vld [vmem:[#allocation5 + $0x18] sm:$0xff]
    %vm46 = vcmask 130048
    %v48 = vsel %vm46, %v40, 0
    %50 = vmatprep.subr.mxu0 0.0
    %51 = vmatpush1.msra.mxu0 %v42
    %52 = vmatprep.subr.mxu0 0.0
    %53 = vmatpush1.msra.mxu0 %v43
    %54 = vmatprep.subr.mxu0 0.0
    %55 = vmatpush1.msra.mxu0 0.0
    %56 = vmatprep.subr.mxu0 0.0
    %57 = vmatpush1.msra.mxu0 0.0
    %58 = vmatprep.subr.mxu0 0.0
    %59 = vmatpush1.msra.mxu0 0.0
    %60 = vmatprep.subr.mxu0 0.0
    %61 = vmatpush1.msra.mxu0 0.0
    %62 = vmatprep.subr.mxu0 0.0
    %63 = vmatpush1.msra.mxu0 0.0
    %64 = vmatprep.subr.mxu0 0.0
    %65 = vmatpush1.msra.mxu0 0.0
    %66 = vmatprep.subr.mxu0 0.0
    %67 = vmatpush1.msra.mxu0 0.0
    %68 = vmatprep.subr.mxu0 0.0
    %69 = vmatpush1.msra.mxu0 0.0
    %70 = vmatprep.subr.mxu0 0.0
    %71 = vmatpush1.msra.mxu0 0.0
    %72 = vmatprep.subr.mxu0 0.0
    %73 = vmatpush1.msra.mxu0 0.0
    %74 = vmatprep.subr.mxu0 0.0
    %75 = vmatpush1.msra.mxu0 0.0
    %76 = vmatprep.subr.mxu0 0.0
    %77 = vmatpush1.msra.mxu0 0.0
    %78 = vmatprep.subr.mxu0 0.0
    %79 = vmatpush1.msra.mxu0 0.0
    %80 = vmatprep.subr.mxu0 0.0
    %81 = vmatpush1.msra.mxu0 0.0
    %82 = vmatprep.subr.mxu0 0.0
    %83 = vmatpush1.msra.mxu0 0.0
    %84 = vmatprep.subr.mxu0 0.0
    %85 = vmatpush1.msra.mxu0 0.0
    %86 = vmatprep.subr.mxu0 0.0
    %87 = vmatpush1.msra.mxu0 0.0
    %88 = vmatprep.subr.mxu0 0.0
    %89 = vmatpush1.msra.mxu0 0.0
    %90 = vmatprep.subr.mxu0 0.0
    %91 = vmatpush1.msra.mxu0 0.0
    %92 = vmatprep.subr.mxu0 0.0
    %93 = vmatpush1.msra.mxu0 0.0
    %94 = vmatprep.subr.mxu0 0.0
    %95 = vmatpush1.msra.mxu0 0.0
    %96 = vmatprep.subr.mxu0 0.0
    %97 = vmatpush1.msra.mxu0 0.0
    %98 = vmatprep.subr.mxu0 0.0
    %99 = vmatpush1.msra.mxu0 0.0
    %100 = vmatprep.subr.mxu0 0.0
    %101 = vmatpush1.msra.mxu0 0.0
    %102 = vmatprep.subr.mxu0 0.0
    %103 = vmatpush1.msra.mxu0 0.0
    %104 = vmatprep.subr.mxu0 0.0
    %105 = vmatpush1.msra.mxu0 0.0
    %106 = vmatprep.subr.mxu0 0.0
    %107 = vmatpush1.msra.mxu0 0.0
    %108 = vmatprep.subr.mxu0 0.0
    %109 = vmatpush1.msra.mxu0 0.0
    %110 = vmatprep.subr.mxu0 0.0
    %111 = vmatpush1.msra.mxu0 0.0
    %112 = vmatprep.subr.mxu0 0.0
    %113 = vmatpush1.msra.mxu0 0.0
    %114 = vmatprep.mubr.f32.mxu0 0.0
    %115 = vmatmul.mubr.f32.gmra.mrb[0].mxu0 %v48
    %v116 = vpop.f32.mrb[0].mxu0
    %v117 = vadd.f32 0.0, %v116
    %v118 = vpop.f32.mrb[0].mxu0
    %119 = vdwg.mxu0
    %v121 = vsel %vm46, %v41, 0
    %123 = vmatprep.subr.mxu0 0.0
    %124 = vmatpush1.msra.mxu0 %v44
    %125 = vmatprep.subr.mxu0 0.0
    %126 = vmatpush1.msra.mxu0 %v45
    %127 = vmatprep.subr.mxu0 0.0
    %128 = vmatpush1.msra.mxu0 0.0
    %129 = vmatprep.subr.mxu0 0.0
    %130 = vmatpush1.msra.mxu0 0.0
    %131 = vmatprep.subr.mxu0 0.0
    %132 = vmatpush1.msra.mxu0 0.0
    %133 = vmatprep.subr.mxu0 0.0
    %134 = vmatpush1.msra.mxu0 0.0
    %135 = vmatprep.subr.mxu0 0.0
    %136 = vmatpush1.msra.mxu0 0.0
    %137 = vmatprep.subr.mxu0 0.0
    %138 = vmatpush1.msra.mxu0 0.0
    %139 = vmatprep.subr.mxu0 0.0
    %140 = vmatpush1.msra.mxu0 0.0
    %141 = vmatprep.subr.mxu0 0.0
    %142 = vmatpush1.msra.mxu0 0.0
    %143 = vmatprep.subr.mxu0 0.0
    %144 = vmatpush1.msra.mxu0 0.0
    %145 = vmatprep.subr.mxu0 0.0
    %146 = vmatpush1.msra.mxu0 0.0
    %147 = vmatprep.subr.mxu0 0.0
    %148 = vmatpush1.msra.mxu0 0.0
    %149 = vmatprep.subr.mxu0 0.0
    %150 = vmatpush1.msra.mxu0 0.0
    %151 = vmatprep.subr.mxu0 0.0
    %152 = vmatpush1.msra.mxu0 0.0
    %153 = vmatprep.subr.mxu0 0.0
    %154 = vmatpush1.msra.mxu0 0.0
    %155 = vmatprep.subr.mxu0 0.0
    %156 = vmatpush1.msra.mxu0 0.0
    %157 = vmatprep.subr.mxu0 0.0
    %158 = vmatpush1.msra.mxu0 0.0
    %159 = vmatprep.subr.mxu0 0.0
    %160 = vmatpush1.msra.mxu0 0.0
    %161 = vmatprep.subr.mxu0 0.0
    %162 = vmatpush1.msra.mxu0 0.0
    %163 = vmatprep.subr.mxu0 0.0
    %164 = vmatpush1.msra.mxu0 0.0
    %165 = vmatprep.subr.mxu0 0.0
    %166 = vmatpush1.msra.mxu0 0.0
    %167 = vmatprep.subr.mxu0 0.0
    %168 = vmatpush1.msra.mxu0 0.0
    %169 = vmatprep.subr.mxu0 0.0
    %170 = vmatpush1.msra.mxu0 0.0
    %171 = vmatprep.subr.mxu0 0.0
    %172 = vmatpush1.msra.mxu0 0.0
    %173 = vmatprep.subr.mxu0 0.0
    %174 = vmatpush1.msra.mxu0 0.0
    %175 = vmatprep.subr.mxu0 0.0
    %176 = vmatpush1.msra.mxu0 0.0
    %177 = vmatprep.subr.mxu0 0.0
    %178 = vmatpush1.msra.mxu0 0.0
    %179 = vmatprep.subr.mxu0 0.0
    %180 = vmatpush1.msra.mxu0 0.0
    %181 = vmatprep.subr.mxu0 0.0
    %182 = vmatpush1.msra.mxu0 0.0
    %183 = vmatprep.subr.mxu0 0.0
    %184 = vmatpush1.msra.mxu0 0.0
    %185 = vmatprep.subr.mxu0 0.0
    %186 = vmatpush1.msra.mxu0 0.0
    %187 = vmatprep.mubr.f32.mxu0 0.0
    %188 = vmatmul.mubr.f32.gmra.mrb[0].mxu0 %v121
    %v189 = vpop.f32.mrb[0].mxu0
    %v190 = vadd.f32 0.0, %v189
    %v191 = vpop.f32.mrb[0].mxu0
    %192 = vdwg.mxu0
    %193 = vst [vmem:[#allocation7] sm:$0xff] %v117
    %194 = vst [vmem:[#allocation7 + $0x8] sm:$0xff] %v190
    // Predicated region
    $region18: #{tpu_custom_call.1} parent=1 // pred_check
      _
    $region19: #{tpu_custom_call.1} parent=1 // pred_check_branch
      %196 = sbr.rel (0) target = $region21
    $region20: #{tpu_custom_call.1} parent=1 // pred_region
      %s198 = ssub.s32 256, 256
      %199 = vsyncadd [#allocation4], %s198
      %s200 = sshll.u32 [#allocation7], 4
      %s201 = int_to_ptr.vmem [resolvable:$true] %s200
      %206 = dma.vmem_to_hbm [thread:$0]  %s201, 256, %s2, [#allocation4], 128, 128, 8
    $region21: #{tpu_custom_call.1} parent=1 // pred_fallthru
      _
    // Predicated region
    $region22: #{tpu_custom_call.1} parent=1 // pred_check
      _
    $region23: #{tpu_custom_call.1} parent=1 // pred_check_branch
      %208 = sbr.rel (0) target = $region25
    $region24: #{tpu_custom_call.1} parent=1 // pred_region
      %209 = dma.done [#allocation4], 256
    $region25: #{tpu_custom_call.1} parent=1 // pred_fallthru
      _
    %210 = vsyncpa [#allocation3], 1
    %211 = vsyncpa [#allocation6], 1
    %212 = vsyncpa [#allocation4], 1

</llo_original>
